<compile_context>
chip_gen: v5e
topology: v5e:2x2
jax: 0.10.0
libtpu: 0.0.40
codegen_flags: <defaults>
</compile_context>

<pallas_src>
import functools

import jax
import jax.numpy as jnp
from jax.experimental import pallas as pl
from jax.experimental.pallas import tpu as pltpu


def _mha_kernel(x_ref, wq_ref, wk_ref, wv_ref, wo_ref, b_ref, out_ref, attn_ref,
                *, heads, dim_head, scale, compute_dtype):
    # x_ref:    (1, N, DIM)
    # wq/wk/wv: (heads, DIM, d)     in compute_dtype
    # wo_ref:   (heads, d, DIM)     in compute_dtype
    # b_ref:    (1, DIM)
    # out_ref:  (1, N, DIM)
    # attn_ref: (1, heads, N, N)    f32
    f32 = jnp.float32
    N, DIM = x_ref.shape[1], x_ref.shape[2]

    x = x_ref[0].astype(compute_dtype)                      # (N, DIM)
    xb = jnp.broadcast_to(x, (heads, N, DIM))               # (H, N, DIM)

    # Head-batched QKV projections -> (H, N, d). Same total FLOPs as one
    # (N, DIM) x (DIM, 3*inner) matmul, but the result lands directly in
    # head-major layout: no lane slicing, no relayout.
    q = jnp.einsum('hnD,hDd->hnd', xb, wq_ref[...], preferred_element_type=f32)
    k = jnp.einsum('hnD,hDd->hnd', xb, wk_ref[...], preferred_element_type=f32)
    v = jnp.einsum('hnD,hDd->hnd', xb, wv_ref[...], preferred_element_type=f32)

    # Scaled dot-product attention for all heads at once (f32 softmax math).
    dots = jnp.einsum('hnd,hmd->hnm',
                      q.astype(compute_dtype), k.astype(compute_dtype),
                      preferred_element_type=f32) * scale    # (H, N, N)
    m = jnp.max(dots, axis=-1, keepdims=True)
    e = jnp.exp(dots - m)
    p = e * pl.reciprocal(jnp.sum(e, axis=-1, keepdims=True), approx=True)
    attn_ref[0] = p.astype(attn_ref.dtype)

    ctx = jnp.einsum('hnm,hmd->hnd',
                     p.astype(compute_dtype), v.astype(compute_dtype),
                     preferred_element_type=f32)             # (H, N, d)

    # Output projection fused per head, then summed over heads.
    # Equivalent to rearrange('h n d -> n (h d)') @ W_out, without the
    # lane-dim concatenate / transpose.
    yh = jnp.einsum('hnd,hdD->hnD', ctx.astype(compute_dtype), wo_ref[...],
                    preferred_element_type=f32)              # (H, N, DIM)
    y = jnp.sum(yh, axis=0) + b_ref[...].astype(f32)         # (N, DIM)
    out_ref[0] = y.astype(out_ref.dtype)


def multi_head_attention(x, w_qkv, w_out, b_out, *, heads, dim_head,
                         compute_dtype=jnp.bfloat16):
    """x: (B, N, DIM). Returns (out (B, N, DIM), attn (B, heads, N, N) f32)."""
    B, N, DIM = x.shape
    inner = heads * dim_head
    assert w_qkv.shape == (DIM, 3 * inner)
    assert w_out.shape == (inner, DIM)
    scale = float(dim_head) ** -0.5

    # ---- One-time weight repacking outside the kernel (XLA level) ----------
    # w_qkv columns are packed (h, qkv, d) exactly like the module's
    # rearrange 'b n (h qkv d)'. Split into per-head, per-projection slabs.
    w4 = w_qkv.reshape(DIM, heads, 3, dim_head)          # (DIM, h, qkv, d)
    w4 = jnp.transpose(w4, (2, 1, 0, 3))                 # (qkv, h, DIM, d)
    wq3 = w4[0].astype(compute_dtype)                    # (h, DIM, d)
    wk3 = w4[1].astype(compute_dtype)
    wv3 = w4[2].astype(compute_dtype)
    wo3 = w_out.reshape(heads, dim_head, DIM).astype(compute_dtype)  # (h, d, DIM)
    b2 = b_out.reshape(1, DIM).astype(x.dtype)

    kernel = functools.partial(_mha_kernel, heads=heads, dim_head=dim_head,
                               scale=scale, compute_dtype=compute_dtype)

    out_shape = (
        jax.ShapeDtypeStruct((B, N, DIM), x.dtype),
        jax.ShapeDtypeStruct((B, heads, N, N), jnp.float32),
    )

    # Explicit VMEM budget so block sizing stays valid on v7x's 64 MiB VMEM:
    # double-buffered x/out/attn blocks + resident weights + f32 intermediates.
    cbytes = jnp.dtype(compute_dtype).itemsize
    xbytes = x.dtype.itemsize
    est = (2 * N * DIM * xbytes                 # x block (double-buffered)
           + 2 * N * DIM * xbytes               # out block
           + 2 * heads * N * N * 4              # attn block (f32)
           + 3 * heads * DIM * dim_head * cbytes  # wq/wk/wv (resident)
           + heads * dim_head * DIM * cbytes      # wo
           + DIM * xbytes                         # bias
           + 8 * heads * N * max(N, DIM) * 4)     # f32 intermediates headroom
    vmem_limit = int(min(64 * 1024 * 1024, max(16 * 1024 * 1024, 4 * est)))

    return pl.pallas_call(
        kernel,
        out_shape=out_shape,
        grid_spec=pltpu.PrefetchScalarGridSpec(
            num_scalar_prefetch=0,
            grid=(B,),
            in_specs=[
                pl.BlockSpec((1, N, DIM), lambda b: (b, 0, 0)),
                pl.BlockSpec((heads, DIM, dim_head), lambda b: (0, 0, 0)),
                pl.BlockSpec((heads, DIM, dim_head), lambda b: (0, 0, 0)),
                pl.BlockSpec((heads, DIM, dim_head), lambda b: (0, 0, 0)),
                pl.BlockSpec((heads, dim_head, DIM), lambda b: (0, 0, 0)),
                pl.BlockSpec((1, DIM), lambda b: (0, 0)),
            ],
            out_specs=[
                pl.BlockSpec((1, N, DIM), lambda b: (b, 0, 0)),
                pl.BlockSpec((1, heads, N, N), lambda b: (b, 0, 0, 0)),
            ],
        ),
        compiler_params=pltpu.CompilerParams(
            dimension_semantics=("parallel",),
            vmem_limit_bytes=vmem_limit),
    )(x, wq3, wk3, wv3, wo3, b2)


def _reference(x, w_qkv, w_out, b_out, *, heads, dim_head):
    """Pure-JAX f32 reference mirroring the PyTorch forward."""
    B, N, DIM = x.shape
    scale = float(dim_head) ** -0.5
    qkv = x @ w_qkv                                        # (B, N, h*3*d)
    qkv = qkv.reshape(B, N, heads, 3, dim_head)            # b n h qkv d
    qkv = jnp.transpose(qkv, (0, 2, 1, 3, 4))              # b h n qkv d
    q, k, v = qkv[..., 0, :], qkv[..., 1, :], qkv[..., 2, :]
    dots = jnp.einsum('bhid,bhjd->bhij', q, k) * scale
    attn = jax.nn.softmax(dots, axis=-1)
    out = jnp.einsum('bhij,bhjd->bhid', attn, v)
    out = jnp.transpose(out, (0, 2, 1, 3)).reshape(B, N, heads * dim_head)
    return out @ w_out + b_out, attn


if __name__ == "__main__":
    # Small config consistent with the module: dim=32, heads=4, dim_head=8.
    B, N, DIM = 2, 8, 32
    HEADS, DIM_HEAD = 4, 8
    INNER = HEADS * DIM_HEAD

    key = jax.random.PRNGKey(0)
    kx, kw1, kw2, kb = jax.random.split(key, 4)

    x = jax.random.normal(kx, (B, N, DIM), dtype=jnp.float32)
    w_qkv = jax.random.normal(kw1, (DIM, 3 * INNER), dtype=jnp.float32) * 0.05
    w_out = jax.random.normal(kw2, (INNER, DIM), dtype=jnp.float32) * 0.05
    b_out = jax.random.normal(kb, (DIM,), dtype=jnp.float32) * 0.05

    ref_out, ref_attn = _reference(x, w_qkv, w_out, b_out,
                                   heads=HEADS, dim_head=DIM_HEAD)

    # f32 MXU path: tight check (only the approx reciprocal differs).
    out32, attn32 = multi_head_attention(x, w_qkv, w_out, b_out,
                                         heads=HEADS, dim_head=DIM_HEAD,
                                         compute_dtype=jnp.float32)
    jax.block_until_ready((out32, attn32))
    assert jnp.allclose(out32, ref_out, atol=5e-3, rtol=5e-3)
    assert jnp.allclose(attn32, ref_attn, atol=5e-3, rtol=5e-3)

    # bf16 MXU path (default): looser tolerance vs f32 reference.
    out, attn = multi_head_attention(x, w_qkv, w_out, b_out,
                                     heads=HEADS, dim_head=DIM_HEAD)
    jax.block_until_ready((out, attn))
    assert jnp.allclose(out, ref_out, atol=1e-2, rtol=1e-2)
    assert jnp.allclose(attn, ref_attn, atol=1e-2, rtol=1e-2)

    print("KERNEL_OK")
</pallas_src>

<mosaic_0001>
module attributes {stable_mosaic.version = 11 : i64} {
  func.func @_mha_kernel(%arg0: i32, %arg1: memref<1x8x32xf32, #tpu.memory_space<vmem>>, %arg2: memref<4x32x8xf32, #tpu.memory_space<vmem>>, %arg3: memref<4x32x8xf32, #tpu.memory_space<vmem>>, %arg4: memref<4x32x8xf32, #tpu.memory_space<vmem>>, %arg5: memref<4x8x32xf32, #tpu.memory_space<vmem>>, %arg6: memref<1x32xf32, #tpu.memory_space<vmem>>, %arg7: memref<1x8x32xf32, #tpu.memory_space<vmem>>, %arg8: memref<1x4x8x8xf32, #tpu.memory_space<vmem>>) attributes {dimension_semantics = [#tpu.dimension_semantics<parallel>], iteration_bounds = array<i64: 2>, scalar_prefetch = 0 : i64, scratch_operands = 0 : i64, tpu.core_type = #tpu.core_type<tc>, window_params = [{transform_indices = @transform_0, window_bounds = array<i64: 1, 8, 32>}, {pipeline_mode = #tpu.pipeline_mode<synchronous>, transform_indices = @transform_1, window_bounds = array<i64: 4, 32, 8>}, {pipeline_mode = #tpu.pipeline_mode<synchronous>, transform_indices = @transform_2, window_bounds = array<i64: 4, 32, 8>}, {pipeline_mode = #tpu.pipeline_mode<synchronous>, transform_indices = @transform_3, window_bounds = array<i64: 4, 32, 8>}, {pipeline_mode = #tpu.pipeline_mode<synchronous>, transform_indices = @transform_4, window_bounds = array<i64: 4, 8, 32>}, {pipeline_mode = #tpu.pipeline_mode<synchronous>, transform_indices = @transform_5, window_bounds = array<i64: 1, 32>}, {transform_indices = @transform_6, window_bounds = array<i64: 1, 8, 32>}, {transform_indices = @transform_7, window_bounds = array<i64: 1, 4, 8, 8>}]} {
    %c0 = arith.constant 0 : index
    %c0_0 = arith.constant 0 : index
    %c0_1 = arith.constant 0 : index
    %0 = vector.load %arg1[%c0, %c0_0, %c0_1] : memref<1x8x32xf32, #tpu.memory_space<vmem>>, vector<1x8x32xf32>
    %1 = vector.shape_cast %0 : vector<1x8x32xf32> to vector<8x32xf32>
    %2 = vector.shape_cast %1 : vector<8x32xf32> to vector<1x8x32xf32>
    %3 = vector.broadcast %2 : vector<1x8x32xf32> to vector<4x8x32xf32>
    %c0_2 = arith.constant 0 : index
    %c0_3 = arith.constant 0 : index
    %c0_4 = arith.constant 0 : index
    %4 = vector.load %arg2[%c0_2, %c0_3, %c0_4] : memref<4x32x8xf32, #tpu.memory_space<vmem>>, vector<4x32x8xf32>
    "tpu.trace_start"() <{level = 10 : i32, message = "hnD,hDd->hnd"}> : () -> ()
    %cst = arith.constant dense<0.000000e+00> : vector<4x8x8xf32>
    %5 = tpu.matmul %3, %4, %cst {dimension_numbers = #tpu.dot_dimension_numbers<[2], [1], [1], [2], [0, 0, 0, 1, 1, 2], [0], [0]>} : vector<4x8x32xf32>, vector<4x32x8xf32>, vector<4x8x8xf32> -> vector<4x8x8xf32>
    "tpu.trace_stop"() : () -> ()
    %c0_5 = arith.constant 0 : index
    %c0_6 = arith.constant 0 : index
    %c0_7 = arith.constant 0 : index
    %6 = vector.load %arg3[%c0_5, %c0_6, %c0_7] : memref<4x32x8xf32, #tpu.memory_space<vmem>>, vector<4x32x8xf32>
    "tpu.trace_start"() <{level = 10 : i32, message = "hnD,hDd->hnd"}> : () -> ()
    %cst_8 = arith.constant dense<0.000000e+00> : vector<4x8x8xf32>
    %7 = tpu.matmul %3, %6, %cst_8 {dimension_numbers = #tpu.dot_dimension_numbers<[2], [1], [1], [2], [0, 0, 0, 1, 1, 2], [0], [0]>} : vector<4x8x32xf32>, vector<4x32x8xf32>, vector<4x8x8xf32> -> vector<4x8x8xf32>
    "tpu.trace_stop"() : () -> ()
    %c0_9 = arith.constant 0 : index
    %c0_10 = arith.constant 0 : index
    %c0_11 = arith.constant 0 : index
    %8 = vector.load %arg4[%c0_9, %c0_10, %c0_11] : memref<4x32x8xf32, #tpu.memory_space<vmem>>, vector<4x32x8xf32>
    "tpu.trace_start"() <{level = 10 : i32, message = "hnD,hDd->hnd"}> : () -> ()
    %cst_12 = arith.constant dense<0.000000e+00> : vector<4x8x8xf32>
    %9 = tpu.matmul %3, %8, %cst_12 {dimension_numbers = #tpu.dot_dimension_numbers<[2], [1], [1], [2], [0, 0, 0, 1, 1, 2], [0], [0]>} : vector<4x8x32xf32>, vector<4x32x8xf32>, vector<4x8x8xf32> -> vector<4x8x8xf32>
    "tpu.trace_stop"() : () -> ()
    "tpu.trace_start"() <{level = 10 : i32, message = "hnd,hmd->hnm"}> : () -> ()
    %cst_13 = arith.constant dense<0.000000e+00> : vector<4x8x8xf32>
    %10 = tpu.matmul %5, %7, %cst_13 {dimension_numbers = #tpu.dot_dimension_numbers<[2], [2], [1], [1], [0, 0, 0, 1, 1, 1], [0], [0]>} : vector<4x8x8xf32>, vector<4x8x8xf32>, vector<4x8x8xf32> -> vector<4x8x8xf32>
    "tpu.trace_stop"() : () -> ()
    %cst_14 = arith.constant 0.353553385 : f32
    %11 = vector.broadcast %cst_14 : f32 to vector<4x8x8xf32>
    %12 = arith.mulf %10, %11 : vector<4x8x8xf32>
    %cst_15 = arith.constant dense<0xFF800000> : vector<4x8xf32>
    %13 = vector.multi_reduction <maximumf>, %12, %cst_15 [2] : vector<4x8x8xf32> to vector<4x8xf32>
    %14 = vector.shape_cast %13 : vector<4x8xf32> to vector<4x8x1xf32>
    %15 = vector.broadcast %14 : vector<4x8x1xf32> to vector<4x8x8xf32>
    %16 = arith.subf %12, %15 : vector<4x8x8xf32>
    %17 = math.exp %16 : vector<4x8x8xf32>
    %cst_16 = arith.constant dense<0.000000e+00> : vector<4x8xf32>
    %18 = vector.multi_reduction <add>, %17, %cst_16 [2] : vector<4x8x8xf32> to vector<4x8xf32>
    %19 = vector.shape_cast %18 : vector<4x8xf32> to vector<4x8x1xf32>
    %20 = tpu.reciprocal %19 {approx = true} : vector<4x8x1xf32> -> vector<4x8x1xf32>
    %21 = vector.broadcast %20 : vector<4x8x1xf32> to vector<4x8x8xf32>
    %22 = arith.mulf %17, %21 : vector<4x8x8xf32>
    %c0_17 = arith.constant 0 : index
    %c0_18 = arith.constant 0 : index
    %c0_19 = arith.constant 0 : index
    %c0_20 = arith.constant 0 : index
    %23 = vector.load %arg8[%c0_17, %c0_18, %c0_19, %c0_20] : memref<1x4x8x8xf32, #tpu.memory_space<vmem>>, vector<1x4x8x8xf32>
    %24 = vector.shape_cast %23 : vector<1x4x8x8xf32> to vector<4x8x8xf32>
    %25 = vector.shape_cast %22 : vector<4x8x8xf32> to vector<1x4x8x8xf32>
    tpu.vector_store %arg8[%c0_17, %c0_18, %c0_19, %c0_20], %25 {strides = array<i32>} : memref<1x4x8x8xf32, #tpu.memory_space<vmem>>, vector<1x4x8x8xf32>,
    "tpu.trace_start"() <{level = 10 : i32, message = "hnm,hmd->hnd"}> : () -> ()
    %cst_21 = arith.constant dense<0.000000e+00> : vector<4x8x8xf32>
    %26 = tpu.matmul %22, %9, %cst_21 {dimension_numbers = #tpu.dot_dimension_numbers<[2], [1], [1], [2], [0, 0, 0, 1, 1, 2], [0], [0]>} : vector<4x8x8xf32>, vector<4x8x8xf32>, vector<4x8x8xf32> -> vector<4x8x8xf32>
    "tpu.trace_stop"() : () -> ()
    %c0_22 = arith.constant 0 : index
    %c0_23 = arith.constant 0 : index
    %c0_24 = arith.constant 0 : index
    %27 = vector.load %arg5[%c0_22, %c0_23, %c0_24] : memref<4x8x32xf32, #tpu.memory_space<vmem>>, vector<4x8x32xf32>
    "tpu.trace_start"() <{level = 10 : i32, message = "hnd,hdD->hnD"}> : () -> ()
    %cst_25 = arith.constant dense<0.000000e+00> : vector<4x8x32xf32>
    %28 = tpu.matmul %26, %27, %cst_25 {dimension_numbers = #tpu.dot_dimension_numbers<[2], [1], [1], [2], [0, 0, 0, 1, 1, 2], [0], [0]>} : vector<4x8x8xf32>, vector<4x8x32xf32>, vector<4x8x32xf32> -> vector<4x8x32xf32>
    "tpu.trace_stop"() : () -> ()
    %cst_26 = arith.constant dense<0.000000e+00> : vector<8x32xf32>
    %29 = vector.multi_reduction <add>, %28, %cst_26 [0] : vector<4x8x32xf32> to vector<8x32xf32>
    %c0_27 = arith.constant 0 : index
    %c0_28 = arith.constant 0 : index
    %30 = vector.load %arg6[%c0_27, %c0_28] : memref<1x32xf32, #tpu.memory_space<vmem>>, vector<1x32xf32>
    %31 = vector.broadcast %30 : vector<1x32xf32> to vector<8x32xf32>
    %32 = arith.addf %29, %31 : vector<8x32xf32>
    %c0_29 = arith.constant 0 : index
    %c0_30 = arith.constant 0 : index
    %c0_31 = arith.constant 0 : index
    %33 = vector.load %arg7[%c0_29, %c0_30, %c0_31] : memref<1x8x32xf32, #tpu.memory_space<vmem>>, vector<1x8x32xf32>
    %34 = vector.shape_cast %33 : vector<1x8x32xf32> to vector<8x32xf32>
    %35 = vector.shape_cast %32 : vector<8x32xf32> to vector<1x8x32xf32>
    tpu.vector_store %arg7[%c0_29, %c0_30, %c0_31], %35 {strides = array<i32>} : memref<1x8x32xf32, #tpu.memory_space<vmem>>, vector<1x8x32xf32>,
    return
  }
  func.func @transform_0(%arg0: i32) -> (i32, i32, i32) {
    %c0_i32 = arith.constant 0 : i32
    %c0_i32_0 = arith.constant 0 : i32
    %c0_i32_1 = arith.constant 0 : i32
    return %arg0, %c0_i32, %c0_i32_0 : i32, i32, i32
  }
  func.func @transform_1(%arg0: i32) -> (i32, i32, i32) {
    %c0_i32 = arith.constant 0 : i32
    %c0_i32_0 = arith.constant 0 : i32
    %c0_i32_1 = arith.constant 0 : i32
    %c0_i32_2 = arith.constant 0 : i32
    return %c0_i32, %c0_i32_0, %c0_i32_1 : i32, i32, i32
  }
  func.func @transform_2(%arg0: i32) -> (i32, i32, i32) {
    %c0_i32 = arith.constant 0 : i32
    %c0_i32_0 = arith.constant 0 : i32
    %c0_i32_1 = arith.constant 0 : i32
    %c0_i32_2 = arith.constant 0 : i32
    return %c0_i32, %c0_i32_0, %c0_i32_1 : i32, i32, i32
  }
  func.func @transform_3(%arg0: i32) -> (i32, i32, i32) {
    %c0_i32 = arith.constant 0 : i32
    %c0_i32_0 = arith.constant 0 : i32
    %c0_i32_1 = arith.constant 0 : i32
    %c0_i32_2 = arith.constant 0 : i32
    return %c0_i32, %c0_i32_0, %c0_i32_1 : i32, i32, i32
  }
  func.func @transform_4(%arg0: i32) -> (i32, i32, i32) {
    %c0_i32 = arith.constant 0 : i32
    %c0_i32_0 = arith.constant 0 : i32
    %c0_i32_1 = arith.constant 0 : i32
    %c0_i32_2 = arith.constant 0 : i32
    return %c0_i32, %c0_i32_0, %c0_i32_1 : i32, i32, i32
  }
  func.func @transform_5(%arg0: i32) -> (i32, i32) {
    %c0_i32 = arith.constant 0 : i32
    %c0_i32_0 = arith.constant 0 : i32
    %c0_i32_1 = arith.constant 0 : i32
    return %c0_i32, %c0_i32_0 : i32, i32
  }
  func.func @transform_6(%arg0: i32) -> (i32, i32, i32) {
    %c0_i32 = arith.constant 0 : i32
    %c0_i32_0 = arith.constant 0 : i32
    %c0_i32_1 = arith.constant 0 : i32
    return %arg0, %c0_i32, %c0_i32_0 : i32, i32, i32
  }
  func.func @transform_7(%arg0: i32) -> (i32, i32, i32, i32) {
    %c0_i32 = arith.constant 0 : i32
    %c0_i32_0 = arith.constant 0 : i32
    %c0_i32_1 = arith.constant 0 : i32
    %c0_i32_2 = arith.constant 0 : i32
    return %arg0, %c0_i32, %c0_i32_0, %c0_i32_1 : i32, i32, i32, i32
  }
}

</mosaic_0001>

<llo_original>
// kernel: tpu_custom_call.1
$region0: #{tpu_custom_call.1}
  #allocation0 [shape = 'u32[]', space=smem, size = 0x4, offset = 0x4, fixed_abs, tag = 'smem constant byte address 0x4 - core index']
  #allocation1 [shape = 'u32[72,128]{1,0:T(1,128)}', space=vmem, size = 0x9000, scoped, tag = 'internal scratch']
  %s0 = inlined_call_operand.vmem [shape: f32[2,8,32], index: 0, kind: input, shape index: {}]
  %s1 = inlined_call_operand.vmem [shape: f32[4,32,8], index: 1, kind: input, shape index: {}]
  %s2 = inlined_call_operand.vmem [shape: f32[4,32,8], index: 2, kind: input, shape index: {}]
  %s3 = inlined_call_operand.vmem [shape: f32[4,32,8], index: 3, kind: input, shape index: {}]
  %s4 = inlined_call_operand.vmem [shape: f32[4,8,32], index: 4, kind: input, shape index: {}]
  %s5 = inlined_call_operand.vmem [shape: f32[1,32], index: 5, kind: input, shape index: {}]
  %s6 = inlined_call_operand.hbm [shape: f32[2,8,32], index: 6, kind: output, shape index: {0}]
  %s7 = inlined_call_operand.hbm [shape: f32[2,4,8,8], index: 7, kind: output, shape index: {1}]
  %8 = xla_tuple %s6, %s7
  %s9 = sld [smem:[#allocation0]]
  $region65: #{tpu_custom_call.1} parent=0
    _
  %s11 = ssub.s32 1, %s9
  %s12 = scalar_select 0, %s11, %s9
  $region1: #{tpu_custom_call.1} parent=0
    #allocation2 [shape = 'u8[8192]{0}', space=vmem, size = 0x2000, scoped, tag = 'output window, operand 0']
    #allocation3 [shape = 's32[2]{0}', space=sflag, size = 0x8, scoped, tag = 'scoped memory for tpu_custom_call.1']
    #allocation4 [shape = 'u8[32768]{0}', space=vmem, size = 0x8000, scoped, tag = 'output window, operand 1']
    #allocation5 [shape = 's32[2]{0}', space=sflag, size = 0x8, scoped, tag = 'scoped memory for tpu_custom_call.1']
    %13 = vsyncpa [#allocation3], 0
    %s14 = scalar_lea.sflag [#allocation3], 1
    %15 = vsyncpa %s14, 0
    %16 = vsyncpa [#allocation5], 0
    %s17 = scalar_lea.sflag [#allocation5], 1
    %18 = vsyncpa %s17, 0
    loop: start=0, step=1, limit=4
    $region2: #{tpu_custom_call.1} parent=1 // loop_pre_header
      _
    $region3: #{tpu_custom_call.1} parent=1 // loop_header
      %s20 = sphi 0, %s24
      %p21 = scmp.ge.s32.totalorder %s20, 4
      %s30 = sphi 0, %s32
      %s33 = sphi 0, %s30
      %s34 = sphi 0, %s33
      %s50 = sphi 0, %s34
      %s54 = sphi 0, %s54
      %s56 = sphi 0, %s54
      %s57 = sphi 0, %s56
      %s71 = sphi 0, %s57
      %s75 = sphi 0, %s75
      %s77 = sphi 0, %s75
      %s78 = sphi 0, %s77
      %s92 = sphi 0, %s78
      %s96 = sphi 0, %s96
      %s98 = sphi 0, %s96
      %s99 = sphi 0, %s98
      %s113 = sphi 0, %s99
      %s117 = sphi 0, %s117
      %s119 = sphi 0, %s117
      %s120 = sphi 0, %s119
      %s134 = sphi 0, %s120
      %s138 = sphi 0, %s138
      %s140 = sphi 0, %s138
      %s141 = sphi 0, %s140
      %s155 = sphi 0, %s141
      %s161 = sphi 0, %s163
      %s164 = sphi 0, %s161
      %s165 = sphi 0, %s164
      %s181 = sphi 0, %s165
      %s187 = sphi 0, %s189
      %s190 = sphi 0, %s187
      %s191 = sphi 0, %s190
      %s207 = sphi 0, %s191
    $region4: #{tpu_custom_call.1} parent=1 // loop_header_branch
      %23 = sbr.rel (%p21) target = $region8
    $region5: #{tpu_custom_call.1} parent=1 // loop_body
      %s25 = ssub.s32 %s20, 1
      %s26 = ssub.s32 %s20, 2
      %s27 = sadd.s32 %s20, 1
      %s28 = ssub.s32 %s20, %s27
      %p29 = scmp.eq.s32.totalorder %s28, 0
      %s31 = sadd.s32 %s30, 1
      %s32 = scalar_select %p29, %s30, %s31
      %p35 = pneg %p29
      %p36 = scmp.eq.s32.totalorder %s20, 1
      %p37 = por %p35, %p36
      %p38 = scmp.ne.s32.totalorder %s30, %s33
      %p39 = scmp.eq.s32.totalorder %s20, 0
      %p40 = por %p38, %p39
      %p41 = scmp.ne.s32.totalorder %s30, %s33
      %p42 = scmp.eq.s32.totalorder %s25, 1
      %p43 = por %p41, %p42
      %p44 = scmp.ne.s32.totalorder %s33, %s34
      %p45 = scmp.eq.s32.totalorder %s25, 0
      %p46 = por %p44, %p45
      %p47 = scmp.ne.s32.totalorder %s33, %s34
      %p48 = scmp.eq.s32.totalorder %s26, 1
      %p49 = por %p47, %p48
      %p51 = scmp.ne.s32.totalorder %s34, %s50
      %p52 = scmp.eq.s32.totalorder %s26, 0
      %p53 = por %p51, %p52
      %s55 = sadd.s32 %s54, 1
      %p58 = scmp.eq.s32.totalorder %s20, 1
      %p59 = scmp.ne.s32.totalorder %s54, %s56
      %p60 = scmp.eq.s32.totalorder %s20, 0
      %p61 = por %p59, %p60
      %p62 = scmp.ne.s32.totalorder %s54, %s56
      %p63 = scmp.eq.s32.totalorder %s25, 1
      %p64 = por %p62, %p63
      %p65 = scmp.ne.s32.totalorder %s56, %s57
      %p66 = scmp.eq.s32.totalorder %s25, 0
      %p67 = por %p65, %p66
      %p68 = scmp.ne.s32.totalorder %s56, %s57
      %p69 = scmp.eq.s32.totalorder %s26, 1
      %p70 = por %p68, %p69
      %p72 = scmp.ne.s32.totalorder %s57, %s71
      %p73 = scmp.eq.s32.totalorder %s26, 0
      %p74 = por %p72, %p73
      %s76 = sadd.s32 %s75, 1
      %p79 = scmp.eq.s32.totalorder %s20, 1
      %p80 = scmp.ne.s32.totalorder %s75, %s77
      %p81 = scmp.eq.s32.totalorder %s20, 0
      %p82 = por %p80, %p81
      %p83 = scmp.ne.s32.totalorder %s75, %s77
      %p84 = scmp.eq.s32.totalorder %s25, 1
      %p85 = por %p83, %p84
      %p86 = scmp.ne.s32.totalorder %s77, %s78
      %p87 = scmp.eq.s32.totalorder %s25, 0
      %p88 = por %p86, %p87
      %p89 = scmp.ne.s32.totalorder %s77, %s78
      %p90 = scmp.eq.s32.totalorder %s26, 1
      %p91 = por %p89, %p90
      %p93 = scmp.ne.s32.totalorder %s78, %s92
      %p94 = scmp.eq.s32.totalorder %s26, 0
      %p95 = por %p93, %p94
      %s97 = sadd.s32 %s96, 1
      %p100 = scmp.eq.s32.totalorder %s20, 1
      %p101 = scmp.ne.s32.totalorder %s96, %s98
      %p102 = scmp.eq.s32.totalorder %s20, 0
      %p103 = por %p101, %p102
      %p104 = scmp.ne.s32.totalorder %s96, %s98
      %p105 = scmp.eq.s32.totalorder %s25, 1
      %p106 = por %p104, %p105
      %p107 = scmp.ne.s32.totalorder %s98, %s99
      %p108 = scmp.eq.s32.totalorder %s25, 0
      %p109 = por %p107, %p108
      %p110 = scmp.ne.s32.totalorder %s98, %s99
      %p111 = scmp.eq.s32.totalorder %s26, 1
      %p112 = por %p110, %p111
      %p114 = scmp.ne.s32.totalorder %s99, %s113
      %p115 = scmp.eq.s32.totalorder %s26, 0
      %p116 = por %p114, %p115
      %s118 = sadd.s32 %s117, 1
      %p121 = scmp.eq.s32.totalorder %s20, 1
      %p122 = scmp.ne.s32.totalorder %s117, %s119
      %p123 = scmp.eq.s32.totalorder %s20, 0
      %p124 = por %p122, %p123
      %p125 = scmp.ne.s32.totalorder %s117, %s119
      %p126 = scmp.eq.s32.totalorder %s25, 1
      %p127 = por %p125, %p126
      %p128 = scmp.ne.s32.totalorder %s119, %s120
      %p129 = scmp.eq.s32.totalorder %s25, 0
      %p130 = por %p128, %p129
      %p131 = scmp.ne.s32.totalorder %s119, %s120
      %p132 = scmp.eq.s32.totalorder %s26, 1
      %p133 = por %p131, %p132
      %p135 = scmp.ne.s32.totalorder %s120, %s134
      %p136 = scmp.eq.s32.totalorder %s26, 0
      %p137 = por %p135, %p136
      %s139 = sadd.s32 %s138, 1
      %p142 = scmp.eq.s32.totalorder %s20, 1
      %p143 = scmp.ne.s32.totalorder %s138, %s140
      %p144 = scmp.eq.s32.totalorder %s20, 0
      %p145 = por %p143, %p144
      %p146 = scmp.ne.s32.totalorder %s138, %s140
      %p147 = scmp.eq.s32.totalorder %s25, 1
      %p148 = por %p146, %p147
      %p149 = scmp.ne.s32.totalorder %s140, %s141
      %p150 = scmp.eq.s32.totalorder %s25, 0
      %p151 = por %p149, %p150
      %p152 = scmp.ne.s32.totalorder %s140, %s141
      %p153 = scmp.eq.s32.totalorder %s26, 1
      %p154 = por %p152, %p153
      %p156 = scmp.ne.s32.totalorder %s141, %s155
      %p157 = scmp.eq.s32.totalorder %s26, 0
      %p158 = por %p156, %p157
      %s159 = ssub.s32 %s20, %s27
      %p160 = scmp.eq.s32.totalorder %s159, 0
      %s162 = sadd.s32 %s161, 1
      %s163 = scalar_select %p160, %s161, %s162
      %p166 = pneg %p160
      %p167 = scmp.eq.s32.totalorder %s20, 1
      %p168 = por %p166, %p167
      %p169 = scmp.ne.s32.totalorder %s161, %s164
      %p170 = scmp.eq.s32.totalorder %s20, 0
      %p171 = por %p169, %p170
      %p172 = scmp.ne.s32.totalorder %s161, %s164
      %p173 = scmp.eq.s32.totalorder %s25, 1
      %p174 = por %p172, %p173
      %p175 = scmp.ne.s32.totalorder %s164, %s165
      %p176 = scmp.eq.s32.totalorder %s25, 0
      %p177 = por %p175, %p176
      %p178 = scmp.ne.s32.totalorder %s164, %s165
      %p179 = scmp.eq.s32.totalorder %s26, 1
      %p180 = por %p178, %p179
      %p182 = scmp.ne.s32.totalorder %s165, %s181
      %p183 = scmp.eq.s32.totalorder %s26, 0
      %p184 = por %p182, %p183
      %s185 = ssub.s32 %s20, %s27
      %p186 = scmp.eq.s32.totalorder %s185, 0
      %s188 = sadd.s32 %s187, 1
      %s189 = scalar_select %p186, %s187, %s188
      %p192 = pneg %p186
      %p193 = scmp.eq.s32.totalorder %s20, 1
      %p194 = por %p192, %p193
      %p195 = scmp.ne.s32.totalorder %s187, %s190
      %p196 = scmp.eq.s32.totalorder %s20, 0
      %p197 = por %p195, %p196
      %p198 = scmp.ne.s32.totalorder %s187, %s190
      %p199 = scmp.eq.s32.totalorder %s25, 1
      %p200 = por %p198, %p199
      %p201 = scmp.ne.s32.totalorder %s190, %s191
      %p202 = scmp.eq.s32.totalorder %s25, 0
      %p203 = por %p201, %p202
      %p204 = scmp.ne.s32.totalorder %s190, %s191
      %p205 = scmp.eq.s32.totalorder %s26, 1
      %p206 = por %p204, %p205
      %p208 = scmp.ne.s32.totalorder %s191, %s207
      %p209 = scmp.eq.s32.totalorder %s26, 0
      %p210 = por %p208, %p209
      %p211 = scmp.le.s32.totalorder 1, %s20
      %p212 = scmp.lt.s32.totalorder %s20, 3
      %p213 = pnand %p211, %p212
      %p214 = pneg %p213
      // Predicated region
      $region9: #{tpu_custom_call.1} parent=5 // pred_check
        _
      $region10: #{tpu_custom_call.1} parent=5 // pred_check_branch
        %216 = sbr.rel (%p213) target = $region12
      $region11: #{tpu_custom_call.1} parent=5 // pred_region
        %s217 = ssub.s32 %s20, 1
        // Predicated region
        $region13: #{tpu_custom_call.1} parent=11 // pred_check
          %p218 = pneg %p67
        $region14: #{tpu_custom_call.1} parent=11 // pred_check_branch
          %220 = sbr.rel (%p218) target = $region16
        $region15: #{tpu_custom_call.1} parent=11 // pred_region
          _
        $region16: #{tpu_custom_call.1} parent=11 // pred_fallthru
          _
        // Predicated region
        $region17: #{tpu_custom_call.1} parent=11 // pred_check
          %p221 = pneg %p88
        $region18: #{tpu_custom_call.1} parent=11 // pred_check_branch
          %223 = sbr.rel (%p221) target = $region20
        $region19: #{tpu_custom_call.1} parent=11 // pred_region
          _
        $region20: #{tpu_custom_call.1} parent=11 // pred_fallthru
          _
        // Predicated region
        $region21: #{tpu_custom_call.1} parent=11 // pred_check
          %p224 = pneg %p109
        $region22: #{tpu_custom_call.1} parent=11 // pred_check_branch
          %226 = sbr.rel (%p224) target = $region24
        $region23: #{tpu_custom_call.1} parent=11 // pred_region
          _
        $region24: #{tpu_custom_call.1} parent=11 // pred_fallthru
          _
        // Predicated region
        $region25: #{tpu_custom_call.1} parent=11 // pred_check
          %p227 = pneg %p130
        $region26: #{tpu_custom_call.1} parent=11 // pred_check_branch
          %229 = sbr.rel (%p227) target = $region28
        $region27: #{tpu_custom_call.1} parent=11 // pred_region
          _
        $region28: #{tpu_custom_call.1} parent=11 // pred_fallthru
          _
        // Predicated region
        $region29: #{tpu_custom_call.1} parent=11 // pred_check
          %p230 = pneg %p151
        $region30: #{tpu_custom_call.1} parent=11 // pred_check_branch
          %232 = sbr.rel (%p230) target = $region32
        $region31: #{tpu_custom_call.1} parent=11 // pred_region
          _
        $region32: #{tpu_custom_call.1} parent=11 // pred_fallthru
          _
      $region12: #{tpu_custom_call.1} parent=5 // pred_fallthru
        _
      %p233 = scmp.lt.s32.totalorder %s20, 2
      // Predicated region
      $region33: #{tpu_custom_call.1} parent=5 // pred_check
        %p234 = pneg %p233
      $region34: #{tpu_custom_call.1} parent=5 // pred_check_branch
        %236 = sbr.rel (%p234) target = $region36
      $region35: #{tpu_custom_call.1} parent=5 // pred_region
        // Predicated region
        $region37: #{tpu_custom_call.1} parent=35 // pred_check
          %p237 = pneg %p40
        $region38: #{tpu_custom_call.1} parent=35 // pred_check_branch
          %239 = sbr.rel (%p237) target = $region40
        $region39: #{tpu_custom_call.1} parent=35 // pred_region
          %p240 = scmp.lt.s32.totalorder %s20, 1
          %s241 = scalar_select %p240, %s20, 1
          %s242 = smul.addr %s241, 8
          %s243 = scalar_lea.vmem %s0, %s242
        $region40: #{tpu_custom_call.1} parent=35 // pred_fallthru
          _
      $region36: #{tpu_custom_call.1} parent=5 // pred_fallthru
        _
      %p244 = scmp.le.s32.totalorder 1, %s20
      %p245 = scmp.lt.s32.totalorder %s20, 3
      %p246 = pnand %p244, %p245
      %p247 = pneg %p246
      // Predicated region
      $region41: #{tpu_custom_call.1} parent=5 // pred_check
        _
      $region42: #{tpu_custom_call.1} parent=5 // pred_check_branch
        %249 = sbr.rel (%p246) target = $region44
      $region43: #{tpu_custom_call.1} parent=5 // pred_region
        %s250 = ssub.s32 %s20, 1
        %p251 = scmp.lt.s32.totalorder %s25, 1
        %s252 = scalar_select %p251, %s25, 1
        %s253 = smul.addr %s252, 8
        %s254 = scalar_lea.vmem %s0, %s253
        %p255 = pneg %p46
        %p256 = pneg %p43
        %p257 = pneg %p67
        %p258 = pneg %p64
        %p259 = pneg %p88
        %p260 = pneg %p85
        %p261 = pneg %p109
        %p262 = pneg %p106
        %p263 = pneg %p130
        %p264 = pneg %p127
        %p265 = pneg %p151
        %p266 = pneg %p148
        %p267 = pneg %p177
        %p268 = pneg %p174
        %s269 = sand.u32 %s164, 1
        %s270 = scalar_lea.sflag [#allocation3], %s269
        %s271 = sand.u32 %s164, 1
        %s272 = smul.addr %s271, 8
        %s273 = scalar_lea.vmem [#allocation2], %s272
        %p274 = pneg %p203
        %p275 = pneg %p200
        %s276 = sand.u32 %s190, 1
        %s277 = scalar_lea.sflag [#allocation5], %s276
        %s278 = sand.u32 %s190, 1
        %s279 = smul.addr %s278, 32
        %s280 = scalar_lea.vmem [#allocation4], %s279
        %p281 = scmp.lt.s32.totalorder %s25, 1
        %s282 = scalar_select %p281, %s25, 1
        %s283 = smul.addr %s282, 8
        %s284 = scalar_lea.vmem %s0, %s283
        %v285 = vld [vmem:[%s284] sm:$0xff]
        %v286 = vld [vmem:[%s1] sm:$0xff]
        %v287 = vld [vmem:[%s1 + $0x8] sm:$0xff]
        %v288 = vld [vmem:[%s1 + $0x10] sm:$0xff]
        %v289 = vld [vmem:[%s1 + $0x18] sm:$0xff]
        %v290 = vld [vmem:[%s1 + $0x20] sm:$0xff]
        %v291 = vld [vmem:[%s1 + $0x28] sm:$0xff]
        %v292 = vld [vmem:[%s1 + $0x30] sm:$0xff]
        %v293 = vld [vmem:[%s1 + $0x38] sm:$0xff]
        %v294 = vld [vmem:[%s1 + $0x40] sm:$0xff]
        %v295 = vld [vmem:[%s1 + $0x48] sm:$0xff]
        %v296 = vld [vmem:[%s1 + $0x50] sm:$0xff]
        %v297 = vld [vmem:[%s1 + $0x58] sm:$0xff]
        %v298 = vld [vmem:[%s1 + $0x60] sm:$0xff]
        %v299 = vld [vmem:[%s1 + $0x68] sm:$0xff]
        %v300 = vld [vmem:[%s1 + $0x70] sm:$0xff]
        %v301 = vld [vmem:[%s1 + $0x78] sm:$0xff]
        %vm302 = vcmask 261120
        %v304 = vsel %vm302, %v285, 0
        %306 = vmatpush.msra.mxu0 0.0
        %307 = vmatpush.msra.mxu0 0.0
        %308 = vmatpush.msra.mxu0 0.0
        %309 = vmatpush.msra.mxu0 0.0
        %310 = vmatpush.msra.mxu0 0.0
        %311 = vmatpush.msra.mxu0 0.0
        %312 = vmatpush.msra.mxu0 0.0
        %313 = vmatpush.msra.mxu0 0.0
        %314 = vmatpush.msra.mxu0 0.0
        %315 = vmatpush.msra.mxu0 0.0
        %316 = vmatpush.msra.mxu0 0.0
        %317 = vmatpush.msra.mxu0 0.0
        %318 = vmatpush.msra.mxu0 %v289
        %319 = vmatpush.msra.mxu0 %v288
        %320 = vmatpush.msra.mxu0 %v287
        %321 = vmatpush.msra.mxu0 %v286
        %322 = vmatmul.f32.gmra.mxu0 %v304
        %v323 = vpop.f32.mrf.mxu0
        %v324 = vadd.f32 0.0, %v323
        %325 = vdwg.mxu0
        %326 = vmatpush.msra.mxu0 0.0
        %327 = vmatpush.msra.mxu0 0.0
        %328 = vmatpush.msra.mxu0 0.0
        %329 = vmatpush.msra.mxu0 0.0
        %330 = vmatpush.msra.mxu0 0.0
        %331 = vmatpush.msra.mxu0 0.0
        %332 = vmatpush.msra.mxu0 0.0
        %333 = vmatpush.msra.mxu0 0.0
        %334 = vmatpush.msra.mxu0 0.0
        %335 = vmatpush.msra.mxu0 0.0
        %336 = vmatpush.msra.mxu0 0.0
        %337 = vmatpush.msra.mxu0 0.0
        %338 = vmatpush.msra.mxu0 %v293
        %339 = vmatpush.msra.mxu0 %v292
        %340 = vmatpush.msra.mxu0 %v291
        %341 = vmatpush.msra.mxu0 %v290
        %342 = vmatmul.f32.gmra.mxu0 %v304
        %v343 = vpop.f32.mrf.mxu0
        %v344 = vadd.f32 0.0, %v343
        %345 = vdwg.mxu0
        %346 = vmatpush.msra.mxu0 0.0
        %347 = vmatpush.msra.mxu0 0.0
        %348 = vmatpush.msra.mxu0 0.0
        %349 = vmatpush.msra.mxu0 0.0
        %350 = vmatpush.msra.mxu0 0.0
        %351 = vmatpush.msra.mxu0 0.0
        %352 = vmatpush.msra.mxu0 0.0
        %353 = vmatpush.msra.mxu0 0.0
        %354 = vmatpush.msra.mxu0 0.0
        %355 = vmatpush.msra.mxu0 0.0
        %356 = vmatpush.msra.mxu0 0.0
        %357 = vmatpush.msra.mxu0 0.0
        %358 = vmatpush.msra.mxu0 %v297
        %359 = vmatpush.msra.mxu0 %v296
        %360 = vmatpush.msra.mxu0 %v295
        %361 = vmatpush.msra.mxu0 %v294
        %362 = vmatmul.f32.gmra.mxu0 %v304
        %v363 = vpop.f32.mrf.mxu0
        %v364 = vadd.f32 0.0, %v363
        %365 = vdwg.mxu0
        %366 = vmatpush.msra.mxu0 0.0
        %367 = vmatpush.msra.mxu0 0.0
        %368 = vmatpush.msra.mxu0 0.0
        %369 = vmatpush.msra.mxu0 0.0
        %370 = vmatpush.msra.mxu0 0.0
        %371 = vmatpush.msra.mxu0 0.0
        %372 = vmatpush.msra.mxu0 0.0
        %373 = vmatpush.msra.mxu0 0.0
        %374 = vmatpush.msra.mxu0 0.0
        %375 = vmatpush.msra.mxu0 0.0
        %376 = vmatpush.msra.mxu0 0.0
        %377 = vmatpush.msra.mxu0 0.0
        %378 = vmatpush.msra.mxu0 %v301
        %379 = vmatpush.msra.mxu0 %v300
        %380 = vmatpush.msra.mxu0 %v299
        %381 = vmatpush.msra.mxu0 %v298
        %382 = vmatmul.f32.gmra.mxu0 %v304
        %v383 = vpop.f32.mrf.mxu0
        %v384 = vadd.f32 0.0, %v383
        %385 = vdwg.mxu0
        %v386 = vld [vmem:[%s2] sm:$0xff]
        %v387 = vld [vmem:[%s2 + $0x8] sm:$0xff]
        %v388 = vld [vmem:[%s2 + $0x10] sm:$0xff]
        %v389 = vld [vmem:[%s2 + $0x18] sm:$0xff]
        %v390 = vld [vmem:[%s2 + $0x20] sm:$0xff]
        %v391 = vld [vmem:[%s2 + $0x28] sm:$0xff]
        %v392 = vld [vmem:[%s2 + $0x30] sm:$0xff]
        %v393 = vld [vmem:[%s2 + $0x38] sm:$0xff]
        %v394 = vld [vmem:[%s2 + $0x40] sm:$0xff]
        %v395 = vld [vmem:[%s2 + $0x48] sm:$0xff]
        %v396 = vld [vmem:[%s2 + $0x50] sm:$0xff]
        %v397 = vld [vmem:[%s2 + $0x58] sm:$0xff]
        %v398 = vld [vmem:[%s2 + $0x60] sm:$0xff]
        %v399 = vld [vmem:[%s2 + $0x68] sm:$0xff]
        %v400 = vld [vmem:[%s2 + $0x70] sm:$0xff]
        %v401 = vld [vmem:[%s2 + $0x78] sm:$0xff]
        %402 = vmatpush.msra.mxu0 0.0
        %403 = vmatpush.msra.mxu0 0.0
        %404 = vmatpush.msra.mxu0 0.0
        %405 = vmatpush.msra.mxu0 0.0
        %406 = vmatpush.msra.mxu0 0.0
        %407 = vmatpush.msra.mxu0 0.0
        %408 = vmatpush.msra.mxu0 0.0
        %409 = vmatpush.msra.mxu0 0.0
        %410 = vmatpush.msra.mxu0 0.0
        %411 = vmatpush.msra.mxu0 0.0
        %412 = vmatpush.msra.mxu0 0.0
        %413 = vmatpush.msra.mxu0 0.0
        %414 = vmatpush.msra.mxu0 %v389
        %415 = vmatpush.msra.mxu0 %v388
        %416 = vmatpush.msra.mxu0 %v387
        %417 = vmatpush.msra.mxu0 %v386
        %418 = vmatmul.f32.gmra.mxu0 %v304
        %v419 = vpop.f32.mrf.mxu0
        %v420 = vadd.f32 0.0, %v419
        %421 = vdwg.mxu0
        %422 = vmatpush.msra.mxu0 0.0
        %423 = vmatpush.msra.mxu0 0.0
        %424 = vmatpush.msra.mxu0 0.0
        %425 = vmatpush.msra.mxu0 0.0
        %426 = vmatpush.msra.mxu0 0.0
        %427 = vmatpush.msra.mxu0 0.0
        %428 = vmatpush.msra.mxu0 0.0
        %429 = vmatpush.msra.mxu0 0.0
        %430 = vmatpush.msra.mxu0 0.0
        %431 = vmatpush.msra.mxu0 0.0
        %432 = vmatpush.msra.mxu0 0.0
        %433 = vmatpush.msra.mxu0 0.0
        %434 = vmatpush.msra.mxu0 %v393
        %435 = vmatpush.msra.mxu0 %v392
        %436 = vmatpush.msra.mxu0 %v391
        %437 = vmatpush.msra.mxu0 %v390
        %438 = vmatmul.f32.gmra.mxu0 %v304
        %v439 = vpop.f32.mrf.mxu0
        %v440 = vadd.f32 0.0, %v439
        %441 = vdwg.mxu0
        %442 = vmatpush.msra.mxu0 0.0
        %443 = vmatpush.msra.mxu0 0.0
        %444 = vmatpush.msra.mxu0 0.0
        %445 = vmatpush.msra.mxu0 0.0
        %446 = vmatpush.msra.mxu0 0.0
        %447 = vmatpush.msra.mxu0 0.0
        %448 = vmatpush.msra.mxu0 0.0
        %449 = vmatpush.msra.mxu0 0.0
        %450 = vmatpush.msra.mxu0 0.0
        %451 = vmatpush.msra.mxu0 0.0
        %452 = vmatpush.msra.mxu0 0.0
        %453 = vmatpush.msra.mxu0 0.0
        %454 = vmatpush.msra.mxu0 %v397
        %455 = vmatpush.msra.mxu0 %v396
        %456 = vmatpush.msra.mxu0 %v395
        %457 = vmatpush.msra.mxu0 %v394
        %458 = vmatmul.f32.gmra.mxu0 %v304
        %v459 = vpop.f32.mrf.mxu0
        %v460 = vadd.f32 0.0, %v459
        %461 = vdwg.mxu0
        %462 = vmatpush.msra.mxu0 0.0
        %463 = vmatpush.msra.mxu0 0.0
        %464 = vmatpush.msra.mxu0 0.0
        %465 = vmatpush.msra.mxu0 0.0
        %466 = vmatpush.msra.mxu0 0.0
        %467 = vmatpush.msra.mxu0 0.0
        %468 = vmatpush.msra.mxu0 0.0
        %469 = vmatpush.msra.mxu0 0.0
        %470 = vmatpush.msra.mxu0 0.0
        %471 = vmatpush.msra.mxu0 0.0
        %472 = vmatpush.msra.mxu0 0.0
        %473 = vmatpush.msra.mxu0 0.0
        %474 = vmatpush.msra.mxu0 %v401
        %475 = vmatpush.msra.mxu0 %v400
        %476 = vmatpush.msra.mxu0 %v399
        %477 = vmatpush.msra.mxu0 %v398
        %478 = vmatmul.f32.gmra.mxu0 %v304
        %v479 = vpop.f32.mrf.mxu0
        %v480 = vadd.f32 0.0, %v479
        %481 = vdwg.mxu0
        %v482 = vld [vmem:[%s3] sm:$0xff]
        %v483 = vld [vmem:[%s3 + $0x8] sm:$0xff]
        %v484 = vld [vmem:[%s3 + $0x10] sm:$0xff]
        %v485 = vld [vmem:[%s3 + $0x18] sm:$0xff]
        %v486 = vld [vmem:[%s3 + $0x20] sm:$0xff]
        %v487 = vld [vmem:[%s3 + $0x28] sm:$0xff]
        %v488 = vld [vmem:[%s3 + $0x30] sm:$0xff]
        %v489 = vld [vmem:[%s3 + $0x38] sm:$0xff]
        %v490 = vld [vmem:[%s3 + $0x40] sm:$0xff]
        %v491 = vld [vmem:[%s3 + $0x48] sm:$0xff]
        %v492 = vld [vmem:[%s3 + $0x50] sm:$0xff]
        %v493 = vld [vmem:[%s3 + $0x58] sm:$0xff]
        %v494 = vld [vmem:[%s3 + $0x60] sm:$0xff]
        %v495 = vld [vmem:[%s3 + $0x68] sm:$0xff]
        %v496 = vld [vmem:[%s3 + $0x70] sm:$0xff]
        %v497 = vld [vmem:[%s3 + $0x78] sm:$0xff]
        %498 = vmatpush.msra.mxu0 0.0
        %499 = vmatpush.msra.mxu0 0.0
        %500 = vmatpush.msra.mxu0 0.0
        %501 = vmatpush.msra.mxu0 0.0
        %502 = vmatpush.msra.mxu0 0.0
        %503 = vmatpush.msra.mxu0 0.0
        %504 = vmatpush.msra.mxu0 0.0
        %505 = vmatpush.msra.mxu0 0.0
        %506 = vmatpush.msra.mxu0 0.0
        %507 = vmatpush.msra.mxu0 0.0
        %508 = vmatpush.msra.mxu0 0.0
        %509 = vmatpush.msra.mxu0 0.0
        %510 = vmatpush.msra.mxu0 %v485
        %511 = vmatpush.msra.mxu0 %v484
        %512 = vmatpush.msra.mxu0 %v483
        %513 = vmatpush.msra.mxu0 %v482
        %514 = vmatmul.f32.gmra.mxu0 %v304
        %v515 = vpop.f32.mrf.mxu0
        %v516 = vadd.f32 0.0, %v515
        %517 = vdwg.mxu0
        %518 = vmatpush.msra.mxu0 0.0
        %519 = vmatpush.msra.mxu0 0.0
        %520 = vmatpush.msra.mxu0 0.0
        %521 = vmatpush.msra.mxu0 0.0
        %522 = vmatpush.msra.mxu0 0.0
        %523 = vmatpush.msra.mxu0 0.0
        %524 = vmatpush.msra.mxu0 0.0
        %525 = vmatpush.msra.mxu0 0.0
        %526 = vmatpush.msra.mxu0 0.0
        %527 = vmatpush.msra.mxu0 0.0
        %528 = vmatpush.msra.mxu0 0.0
        %529 = vmatpush.msra.mxu0 0.0
        %530 = vmatpush.msra.mxu0 %v489
        %531 = vmatpush.msra.mxu0 %v488
        %532 = vmatpush.msra.mxu0 %v487
        %533 = vmatpush.msra.mxu0 %v486
        %534 = vmatmul.f32.gmra.mxu0 %v304
        %v535 = vpop.f32.mrf.mxu0
        %v536 = vadd.f32 0.0, %v535
        %537 = vdwg.mxu0
        %538 = vmatpush.msra.mxu0 0.0
        %539 = vmatpush.msra.mxu0 0.0
        %540 = vmatpush.msra.mxu0 0.0
        %541 = vmatpush.msra.mxu0 0.0
        %542 = vmatpush.msra.mxu0 0.0
        %543 = vmatpush.msra.mxu0 0.0
        %544 = vmatpush.msra.mxu0 0.0
        %545 = vmatpush.msra.mxu0 0.0
        %546 = vmatpush.msra.mxu0 0.0
        %547 = vmatpush.msra.mxu0 0.0
        %548 = vmatpush.msra.mxu0 0.0
        %549 = vmatpush.msra.mxu0 0.0
        %550 = vmatpush.msra.mxu0 %v493
        %551 = vmatpush.msra.mxu0 %v492
        %552 = vmatpush.msra.mxu0 %v491
        %553 = vmatpush.msra.mxu0 %v490
        %554 = vmatmul.f32.gmra.mxu0 %v304
        %v555 = vpop.f32.mrf.mxu0
        %v556 = vadd.f32 0.0, %v555
        %557 = vdwg.mxu0
        %558 = vmatpush.msra.mxu0 0.0
        %559 = vmatpush.msra.mxu0 0.0
        %560 = vmatpush.msra.mxu0 0.0
        %561 = vmatpush.msra.mxu0 0.0
        %562 = vmatpush.msra.mxu0 0.0
        %563 = vmatpush.msra.mxu0 0.0
        %564 = vmatpush.msra.mxu0 0.0
        %565 = vmatpush.msra.mxu0 0.0
        %566 = vmatpush.msra.mxu0 0.0
        %567 = vmatpush.msra.mxu0 0.0
        %568 = vmatpush.msra.mxu0 0.0
        %569 = vmatpush.msra.mxu0 0.0
        %570 = vmatpush.msra.mxu0 %v497
        %571 = vmatpush.msra.mxu0 %v496
        %572 = vmatpush.msra.mxu0 %v495
        %573 = vmatpush.msra.mxu0 %v494
        %574 = vmatmul.f32.gmra.mxu0 %v304
        %v575 = vpop.f32.mrf.mxu0
        %v576 = vadd.f32 0.0, %v575
        %577 = vdwg.mxu0
        %vm578 = vcmask 64512
        %v580 = vsel %vm578, %v324, 0
        %v583 = vsel %vm578, %v420, 0
        %585 = vmatpush.xpose.msra.mxu0 0.0
        %586 = vmatpush.xpose.msra.mxu0 0.0
        %587 = vmatpush.xpose.msra.mxu0 0.0
        %588 = vmatpush.xpose.msra.mxu0 0.0
        %589 = vmatpush.xpose.msra.mxu0 0.0
        %590 = vmatpush.xpose.msra.mxu0 0.0
        %591 = vmatpush.xpose.msra.mxu0 0.0
        %592 = vmatpush.xpose.msra.mxu0 0.0
        %593 = vmatpush.xpose.msra.mxu0 0.0
        %594 = vmatpush.xpose.msra.mxu0 0.0
        %595 = vmatpush.xpose.msra.mxu0 0.0
        %596 = vmatpush.xpose.msra.mxu0 0.0
        %597 = vmatpush.xpose.msra.mxu0 0.0
        %598 = vmatpush.xpose.msra.mxu0 0.0
        %599 = vmatpush.xpose.msra.mxu0 0.0
        %600 = vmatpush.xpose.msra.mxu0 %v583
        %601 = vmatmul.f32.gmra.mxu0 %v580
        %v602 = vpop.f32.mrf.mxu0
        %v603 = vadd.f32 0.0, %v602
        %604 = vdwg.mxu0
        %v606 = vsel %vm578, %v344, 0
        %v609 = vsel %vm578, %v440, 0
        %611 = vmatpush.xpose.msra.mxu0 0.0
        %612 = vmatpush.xpose.msra.mxu0 0.0
        %613 = vmatpush.xpose.msra.mxu0 0.0
        %614 = vmatpush.xpose.msra.mxu0 0.0
        %615 = vmatpush.xpose.msra.mxu0 0.0
        %616 = vmatpush.xpose.msra.mxu0 0.0
        %617 = vmatpush.xpose.msra.mxu0 0.0
        %618 = vmatpush.xpose.msra.mxu0 0.0
        %619 = vmatpush.xpose.msra.mxu0 0.0
        %620 = vmatpush.xpose.msra.mxu0 0.0
        %621 = vmatpush.xpose.msra.mxu0 0.0
        %622 = vmatpush.xpose.msra.mxu0 0.0
        %623 = vmatpush.xpose.msra.mxu0 0.0
        %624 = vmatpush.xpose.msra.mxu0 0.0
        %625 = vmatpush.xpose.msra.mxu0 0.0
        %626 = vmatpush.xpose.msra.mxu0 %v609
        %627 = vmatmul.f32.gmra.mxu0 %v606
        %v628 = vpop.f32.mrf.mxu0
        %v629 = vadd.f32 0.0, %v628
        %630 = vdwg.mxu0
        %v632 = vsel %vm578, %v364, 0
        %v635 = vsel %vm578, %v460, 0
        %637 = vmatpush.xpose.msra.mxu0 0.0
        %638 = vmatpush.xpose.msra.mxu0 0.0
        %639 = vmatpush.xpose.msra.mxu0 0.0
        %640 = vmatpush.xpose.msra.mxu0 0.0
        %641 = vmatpush.xpose.msra.mxu0 0.0
        %642 = vmatpush.xpose.msra.mxu0 0.0
        %643 = vmatpush.xpose.msra.mxu0 0.0
        %644 = vmatpush.xpose.msra.mxu0 0.0
        %645 = vmatpush.xpose.msra.mxu0 0.0
        %646 = vmatpush.xpose.msra.mxu0 0.0
        %647 = vmatpush.xpose.msra.mxu0 0.0
        %648 = vmatpush.xpose.msra.mxu0 0.0
        %649 = vmatpush.xpose.msra.mxu0 0.0
        %650 = vmatpush.xpose.msra.mxu0 0.0
        %651 = vmatpush.xpose.msra.mxu0 0.0
        %652 = vmatpush.xpose.msra.mxu0 %v635
        %653 = vmatmul.f32.gmra.mxu0 %v632
        %v654 = vpop.f32.mrf.mxu0
        %v655 = vadd.f32 0.0, %v654
        %656 = vdwg.mxu0
        %v658 = vsel %vm578, %v384, 0
        %v661 = vsel %vm578, %v480, 0
        %663 = vmatpush.xpose.msra.mxu0 0.0
        %664 = vmatpush.xpose.msra.mxu0 0.0
        %665 = vmatpush.xpose.msra.mxu0 0.0
        %666 = vmatpush.xpose.msra.mxu0 0.0
        %667 = vmatpush.xpose.msra.mxu0 0.0
        %668 = vmatpush.xpose.msra.mxu0 0.0
        %669 = vmatpush.xpose.msra.mxu0 0.0
        %670 = vmatpush.xpose.msra.mxu0 0.0
        %671 = vmatpush.xpose.msra.mxu0 0.0
        %672 = vmatpush.xpose.msra.mxu0 0.0
        %673 = vmatpush.xpose.msra.mxu0 0.0
        %674 = vmatpush.xpose.msra.mxu0 0.0
        %675 = vmatpush.xpose.msra.mxu0 0.0
        %676 = vmatpush.xpose.msra.mxu0 0.0
        %677 = vmatpush.xpose.msra.mxu0 0.0
        %678 = vmatpush.xpose.msra.mxu0 %v661
        %679 = vmatmul.f32.gmra.mxu0 %v658
        %v680 = vpop.f32.mrf.mxu0
        %v681 = vadd.f32 0.0, %v680
        %682 = vdwg.mxu0
        %v683 = vmul.f32 %v603, 0.35355338
        %v684 = vmul.f32 %v629, 0.35355338
        %v685 = vmul.f32 %v655, 0.35355338
        %v686 = vmul.f32 %v681, 0.35355338
        %v687 = vsel %vm578, %v683, -inf
        %688 = vmax.xlane.f32.xlu0 %v687
        %v689 = vpop.xlane.xlu0 %688
        %v690 = vsel %vm578, %v684, -inf
        %691 = vmax.xlane.f32.xlu0 %v690
        %v692 = vpop.xlane.xlu0 %691
        %v693 = vsel %vm578, %v685, -inf
        %694 = vmax.xlane.f32.xlu0 %v693
        %v695 = vpop.xlane.xlu0 %694
        %v696 = vsel %vm578, %v686, -inf
        %697 = vmax.xlane.f32.xlu0 %v696
        %v698 = vpop.xlane.xlu0 %697
        %v699 = vsub.f32 %v683, %v689
        %v700 = vsub.f32 %v684, %v692
        %v701 = vsub.f32 %v685, %v695
        %v702 = vsub.f32 %v686, %v698
        %v703 = vmul.f32 %v699, 1.442695
        %v704 = vpow.pop %v703
        %v705 = vmul.f32 %v700, 1.442695
        %v706 = vpow.pop %v705
        %v707 = vmul.f32 %v701, 1.442695
        %v708 = vpow.pop %v707
        %v709 = vmul.f32 %v702, 1.442695
        %v710 = vpow.pop %v709
        %v711 = vsel %vm578, %v704, 0.0
        %712 = vadd.xlane.f32.xlu0 %v711
        %v713 = vpop.xlane.xlu0 %712
        %v714 = vsel %vm578, %v706, 0.0
        %715 = vadd.xlane.f32.xlu0 %v714
        %v716 = vpop.xlane.xlu0 %715
        %v717 = vsel %vm578, %v708, 0.0
        %718 = vadd.xlane.f32.xlu0 %v717
        %v719 = vpop.xlane.xlu0 %718
        %v720 = vsel %vm578, %v710, 0.0
        %721 = vadd.xlane.f32.xlu0 %v720
        %v722 = vpop.xlane.xlu0 %721
        %v723 = vrcp.pop %v713
        %v724 = vrcp.pop %v716
        %v725 = vrcp.pop %v719
        %v726 = vrcp.pop %v722
        %v727 = vmul.f32 %v704, %v723
        %v728 = vmul.f32 %v706, %v724
        %v729 = vmul.f32 %v708, %v725
        %v730 = vmul.f32 %v710, %v726
        %731 = vst.msk [vmem:[%s280] sm:$0xff] %vm578, %v727
        %732 = vst.msk [vmem:[%s280 + $0x8] sm:$0xff] %vm578, %v728
        %733 = vst.msk [vmem:[%s280 + $0x10] sm:$0xff] %vm578, %v729
        %734 = vst.msk [vmem:[%s280 + $0x18] sm:$0xff] %vm578, %v730
        %v736 = vsel %vm578, %v727, 0
        %738 = vmatpush.msra.mxu0 0.0
        %739 = vmatpush.msra.mxu0 0.0
        %740 = vmatpush.msra.mxu0 0.0
        %741 = vmatpush.msra.mxu0 0.0
        %742 = vmatpush.msra.mxu0 0.0
        %743 = vmatpush.msra.mxu0 0.0
        %744 = vmatpush.msra.mxu0 0.0
        %745 = vmatpush.msra.mxu0 0.0
        %746 = vmatpush.msra.mxu0 0.0
        %747 = vmatpush.msra.mxu0 0.0
        %748 = vmatpush.msra.mxu0 0.0
        %749 = vmatpush.msra.mxu0 0.0
        %750 = vmatpush.msra.mxu0 0.0
        %751 = vmatpush.msra.mxu0 0.0
        %752 = vmatpush.msra.mxu0 0.0
        %753 = vmatpush.msra.mxu0 %v516
        %754 = vmatmul.f32.gmra.mxu0 %v736
        %v755 = vpop.f32.mrf.mxu0
        %v756 = vadd.f32 0.0, %v755
        %757 = vdwg.mxu0
        %v759 = vsel %vm578, %v728, 0
        %761 = vmatpush.msra.mxu0 0.0
        %762 = vmatpush.msra.mxu0 0.0
        %763 = vmatpush.msra.mxu0 0.0
        %764 = vmatpush.msra.mxu0 0.0
        %765 = vmatpush.msra.mxu0 0.0
        %766 = vmatpush.msra.mxu0 0.0
        %767 = vmatpush.msra.mxu0 0.0
        %768 = vmatpush.msra.mxu0 0.0
        %769 = vmatpush.msra.mxu0 0.0
        %770 = vmatpush.msra.mxu0 0.0
        %771 = vmatpush.msra.mxu0 0.0
        %772 = vmatpush.msra.mxu0 0.0
        %773 = vmatpush.msra.mxu0 0.0
        %774 = vmatpush.msra.mxu0 0.0
        %775 = vmatpush.msra.mxu0 0.0
        %776 = vmatpush.msra.mxu0 %v536
        %777 = vmatmul.f32.gmra.mxu0 %v759
        %v778 = vpop.f32.mrf.mxu0
        %v779 = vadd.f32 0.0, %v778
        %780 = vdwg.mxu0
        %v782 = vsel %vm578, %v729, 0
        %784 = vmatpush.msra.mxu0 0.0
        %785 = vmatpush.msra.mxu0 0.0
        %786 = vmatpush.msra.mxu0 0.0
        %787 = vmatpush.msra.mxu0 0.0
        %788 = vmatpush.msra.mxu0 0.0
        %789 = vmatpush.msra.mxu0 0.0
        %790 = vmatpush.msra.mxu0 0.0
        %791 = vmatpush.msra.mxu0 0.0
        %792 = vmatpush.msra.mxu0 0.0
        %793 = vmatpush.msra.mxu0 0.0
        %794 = vmatpush.msra.mxu0 0.0
        %795 = vmatpush.msra.mxu0 0.0
        %796 = vmatpush.msra.mxu0 0.0
        %797 = vmatpush.msra.mxu0 0.0
        %798 = vmatpush.msra.mxu0 0.0
        %799 = vmatpush.msra.mxu0 %v556
        %800 = vmatmul.f32.gmra.mxu0 %v782
        %v801 = vpop.f32.mrf.mxu0
        %v802 = vadd.f32 0.0, %v801
        %803 = vdwg.mxu0
        %v805 = vsel %vm578, %v730, 0
        %807 = vmatpush.msra.mxu0 0.0
        %808 = vmatpush.msra.mxu0 0.0
        %809 = vmatpush.msra.mxu0 0.0
        %810 = vmatpush.msra.mxu0 0.0
        %811 = vmatpush.msra.mxu0 0.0
        %812 = vmatpush.msra.mxu0 0.0
        %813 = vmatpush.msra.mxu0 0.0
        %814 = vmatpush.msra.mxu0 0.0
        %815 = vmatpush.msra.mxu0 0.0
        %816 = vmatpush.msra.mxu0 0.0
        %817 = vmatpush.msra.mxu0 0.0
        %818 = vmatpush.msra.mxu0 0.0
        %819 = vmatpush.msra.mxu0 0.0
        %820 = vmatpush.msra.mxu0 0.0
        %821 = vmatpush.msra.mxu0 0.0
        %822 = vmatpush.msra.mxu0 %v576
        %823 = vmatmul.f32.gmra.mxu0 %v805
        %v824 = vpop.f32.mrf.mxu0
        %v825 = vadd.f32 0.0, %v824
        %826 = vdwg.mxu0
        %v827 = vld [vmem:[%s4] sm:$0xff]
        %v828 = vld [vmem:[%s4 + $0x8] sm:$0xff]
        %v829 = vld [vmem:[%s4 + $0x10] sm:$0xff]
        %v830 = vld [vmem:[%s4 + $0x18] sm:$0xff]
        %v832 = vsel %vm578, %v756, 0
        %834 = vmatpush.msra.mxu0 0.0
        %835 = vmatpush.msra.mxu0 0.0
        %836 = vmatpush.msra.mxu0 0.0
        %837 = vmatpush.msra.mxu0 0.0
        %838 = vmatpush.msra.mxu0 0.0
        %839 = vmatpush.msra.mxu0 0.0
        %840 = vmatpush.msra.mxu0 0.0
        %841 = vmatpush.msra.mxu0 0.0
        %842 = vmatpush.msra.mxu0 0.0
        %843 = vmatpush.msra.mxu0 0.0
        %844 = vmatpush.msra.mxu0 0.0
        %845 = vmatpush.msra.mxu0 0.0
        %846 = vmatpush.msra.mxu0 0.0
        %847 = vmatpush.msra.mxu0 0.0
        %848 = vmatpush.msra.mxu0 0.0
        %849 = vmatpush.msra.mxu0 %v827
        %850 = vmatmul.f32.gmra.mxu0 %v832
        %v851 = vpop.f32.mrf.mxu0
        %v852 = vadd.f32 0.0, %v851
        %853 = vdwg.mxu0
        %v855 = vsel %vm578, %v779, 0
        %857 = vmatpush.msra.mxu0 0.0
        %858 = vmatpush.msra.mxu0 0.0
        %859 = vmatpush.msra.mxu0 0.0
        %860 = vmatpush.msra.mxu0 0.0
        %861 = vmatpush.msra.mxu0 0.0
        %862 = vmatpush.msra.mxu0 0.0
        %863 = vmatpush.msra.mxu0 0.0
        %864 = vmatpush.msra.mxu0 0.0
        %865 = vmatpush.msra.mxu0 0.0
        %866 = vmatpush.msra.mxu0 0.0
        %867 = vmatpush.msra.mxu0 0.0
        %868 = vmatpush.msra.mxu0 0.0
        %869 = vmatpush.msra.mxu0 0.0
        %870 = vmatpush.msra.mxu0 0.0
        %871 = vmatpush.msra.mxu0 0.0
        %872 = vmatpush.msra.mxu0 %v828
        %873 = vmatmul.f32.gmra.mxu0 %v855
        %v874 = vpop.f32.mrf.mxu0
        %v875 = vadd.f32 0.0, %v874
        %876 = vdwg.mxu0
        %v878 = vsel %vm578, %v802, 0
        %880 = vmatpush.msra.mxu0 0.0
        %881 = vmatpush.msra.mxu0 0.0
        %882 = vmatpush.msra.mxu0 0.0
        %883 = vmatpush.msra.mxu0 0.0
        %884 = vmatpush.msra.mxu0 0.0
        %885 = vmatpush.msra.mxu0 0.0
        %886 = vmatpush.msra.mxu0 0.0
        %887 = vmatpush.msra.mxu0 0.0
        %888 = vmatpush.msra.mxu0 0.0
        %889 = vmatpush.msra.mxu0 0.0
        %890 = vmatpush.msra.mxu0 0.0
        %891 = vmatpush.msra.mxu0 0.0
        %892 = vmatpush.msra.mxu0 0.0
        %893 = vmatpush.msra.mxu0 0.0
        %894 = vmatpush.msra.mxu0 0.0
        %895 = vmatpush.msra.mxu0 %v829
        %896 = vmatmul.f32.gmra.mxu0 %v878
        %v897 = vpop.f32.mrf.mxu0
        %v898 = vadd.f32 0.0, %v897
        %899 = vdwg.mxu0
        %v901 = vsel %vm578, %v825, 0
        %903 = vmatpush.msra.mxu0 0.0
        %904 = vmatpush.msra.mxu0 0.0
        %905 = vmatpush.msra.mxu0 0.0
        %906 = vmatpush.msra.mxu0 0.0
        %907 = vmatpush.msra.mxu0 0.0
        %908 = vmatpush.msra.mxu0 0.0
        %909 = vmatpush.msra.mxu0 0.0
        %910 = vmatpush.msra.mxu0 0.0
        %911 = vmatpush.msra.mxu0 0.0
        %912 = vmatpush.msra.mxu0 0.0
        %913 = vmatpush.msra.mxu0 0.0
        %914 = vmatpush.msra.mxu0 0.0
        %915 = vmatpush.msra.mxu0 0.0
        %916 = vmatpush.msra.mxu0 0.0
        %917 = vmatpush.msra.mxu0 0.0
        %918 = vmatpush.msra.mxu0 %v830
        %919 = vmatmul.f32.gmra.mxu0 %v901
        %v920 = vpop.f32.mrf.mxu0
        %v921 = vadd.f32 0.0, %v920
        %922 = vdwg.mxu0
        %v923 = vsel %vm302, %v852, 0.0
        %v924 = vsel %vm302, %v875, 0.0
        %v925 = vadd.f32 %v923, %v924
        %v926 = vsel %vm302, %v898, 0.0
        %v927 = vadd.f32 %v925, %v926
        %v928 = vsel %vm302, %v921, 0.0
        %v929 = vadd.f32 %v927, %v928
        %v930 = vld [vmem:[%s5] sm:$0x1]
        %v932 = vperm.slane %v930, 0
        %v934 = vadd.f32 %v929, %v932
        %935 = vst.msk [vmem:[%s273] sm:$0xff] %vm302, %v934
        %s936 = sand.u32 %s164, 1
        %s937 = scalar_lea.sflag [#allocation3], %s936
        %s938 = sand.u32 %s164, 1
        %s939 = smul.addr %s938, 8
        %s940 = scalar_lea.vmem [#allocation2], %s939
        %s941 = sand.u32 %s190, 1
        %s942 = scalar_lea.sflag [#allocation5], %s941
        %s943 = sand.u32 %s190, 1
        %s944 = smul.addr %s943, 32
        %s945 = scalar_lea.vmem [#allocation4], %s944
        // Predicated region
        $region45: #{tpu_custom_call.1} parent=43 // pred_check
          %p946 = pneg %p174
        $region46: #{tpu_custom_call.1} parent=43 // pred_check_branch
          %948 = sbr.rel (%p946) target = $region48
        $region47: #{tpu_custom_call.1} parent=43 // pred_region
          %950 = vsyncadd %s937, 0
          %s951 = smul.addr %s25, 8
          %s952 = scalar_lea.hbm %s6, %s951
          %s954 = sshll.u32 %s940, 4
          %s955 = int_to_ptr.vmem [resolvable:$true] %s954
          %s956 = sshll.u32 %s952, 4
          %s957 = int_to_ptr.hbm [resolvable:$true] %s956
          %959 = dma.vmem_to_hbm [thread:$0]  %s955, 128, %s957, %s937
        $region48: #{tpu_custom_call.1} parent=43 // pred_fallthru
          _
        // Predicated region
        $region49: #{tpu_custom_call.1} parent=43 // pred_check
          %p960 = pneg %p200
        $region50: #{tpu_custom_call.1} parent=43 // pred_check_branch
          %962 = sbr.rel (%p960) target = $region52
        $region51: #{tpu_custom_call.1} parent=43 // pred_region
          %964 = vsyncadd %s942, 0
          %s965 = smul.addr %s25, 4
          %s966 = smul.addr %s965, 8
          %s967 = scalar_lea.hbm %s7, %s966
          %s968 = sshll.u32 %s945, 4
          %s969 = int_to_ptr.vmem [resolvable:$true] %s968
          %s970 = sshll.u32 %s967, 4
          %s971 = int_to_ptr.hbm [resolvable:$true] %s970
          %976 = dma.vmem_to_hbm [thread:$0]  %s969, 512, %s971, %s942, 128, 128, 8
        $region52: #{tpu_custom_call.1} parent=43 // pred_fallthru
          _
      $region44: #{tpu_custom_call.1} parent=5 // pred_fallthru
        _
      %p977 = scmp.le.s32.totalorder 2, %s20
      // Predicated region
      $region53: #{tpu_custom_call.1} parent=5 // pred_check
        %p978 = pneg %p977
      $region54: #{tpu_custom_call.1} parent=5 // pred_check_branch
        %980 = sbr.rel (%p978) target = $region56
      $region55: #{tpu_custom_call.1} parent=5 // pred_region
        %s981 = ssub.s32 %s20, 2
        // Predicated region
        $region57: #{tpu_custom_call.1} parent=55 // pred_check
          %p982 = pneg %p180
        $region58: #{tpu_custom_call.1} parent=55 // pred_check_branch
          %984 = sbr.rel (%p982) target = $region60
        $region59: #{tpu_custom_call.1} parent=55 // pred_region
          %s985 = sand.u32 %s165, 1
          %s986 = scalar_lea.sflag [#allocation3], %s985
          %s987 = sand.u32 %s165, 1
          %s988 = smul.addr %s987, 8
          %s989 = scalar_lea.vmem [#allocation2], %s988
          %991 = dma.done %s986, 128
        $region60: #{tpu_custom_call.1} parent=55 // pred_fallthru
          _
        // Predicated region
        $region61: #{tpu_custom_call.1} parent=55 // pred_check
          %p992 = pneg %p206
        $region62: #{tpu_custom_call.1} parent=55 // pred_check_branch
          %994 = sbr.rel (%p992) target = $region64
        $region63: #{tpu_custom_call.1} parent=55 // pred_region
          %s995 = sand.u32 %s191, 1
          %s996 = scalar_lea.sflag [#allocation5], %s995
          %s997 = sand.u32 %s191, 1
          %s998 = smul.addr %s997, 32
          %s999 = scalar_lea.vmem [#allocation4], %s998
          %1001 = dma.done %s996, 512
        $region64: #{tpu_custom_call.1} parent=55 // pred_fallthru
          _
      $region56: #{tpu_custom_call.1} parent=5 // pred_fallthru
        _
    $region6: #{tpu_custom_call.1} parent=1 // loop_footer
      %s24 = sadd.s32 1, %s20
    $region7: #{tpu_custom_call.1} parent=1 // loop_footer_branch
      %19 = sbr.rel target = $region3
    $region8: #{tpu_custom_call.1} parent=1 // loop_exit
      _
    %1002 = vsyncpa [#allocation3], 1
    %s1003 = scalar_lea.sflag [#allocation3], 1
    %1004 = vsyncpa %s1003, 1
    %1005 = vsyncpa [#allocation5], 1
    %s1006 = scalar_lea.sflag [#allocation5], 1
    %1007 = vsyncpa %s1006, 1

</llo_original>
